<compile_context>
chip_gen: v5e
topology: v5e:2x2
jax: 0.10.0
libtpu: 0.0.40
codegen_flags: <defaults>
</compile_context>

<pallas_src>
import functools

import jax
import jax.numpy as jnp
from jax import lax
from jax.experimental import pallas as pl
from jax.experimental.pallas import tpu as pltpu

DIM = 6   # input feature dim
W = 64    # hidden width


def _fardepth_kernel(x_ref,
                     w1_ref, b1_ref,
                     w2_ref, b2_ref,
                     w3_ref, b3_ref,
                     wd_ref, bd_ref,
                     o_ref,
                     *, chunk):
    """One grid step processes a (DIM, tile_cols) slab of (transposed) rows."""
    tile_cols = x_ref.shape[1]
    n_chunks = tile_cols // chunk

    # Tiny weights: load once per grid step.  Hoist the lane-broadcasts of the
    # biases out of the inner loop (JAX does not CSE broadcast_in_dim).
    w1 = w1_ref[...]                                    # (W, DIM)  f32
    w2 = w2_ref[...]                                    # (W, W)    bf16
    w3 = w3_ref[...]                                    # (W, W)    bf16
    wd = wd_ref[...]                                    # (1, W)    bf16
    b1 = jnp.broadcast_to(b1_ref[...], (W, chunk))      # (W, chunk) f32
    b2 = jnp.broadcast_to(b2_ref[...], (W, chunk))
    b3 = jnp.broadcast_to(b3_ref[...], (W, chunk))
    bd = jnp.broadcast_to(bd_ref[...], (1, chunk))      # (1, chunk) f32

    def body(c, carry):
        col = pl.multiple_of(c * chunk, chunk)
        xc = x_ref[:, pl.ds(col, chunk)]                # (DIM, chunk) f32

        # base_layers: 3 x (Linear + ReLU).  MXU matmuls (bf16 operands for the
        # W x W layers, f32 accumulation), VPU relu/bias in f32.
        h = jnp.dot(w1, xc, preferred_element_type=jnp.float32) + b1
        h = jnp.maximum(h, 0.0)
        h = jnp.dot(w2, h.astype(jnp.bfloat16),
                    preferred_element_type=jnp.float32) + b2
        h = jnp.maximum(h, 0.0)
        h = jnp.dot(w3, h.astype(jnp.bfloat16),
                    preferred_element_type=jnp.float32) + b3
        h = jnp.maximum(h, 0.0)

        # depth_head: Linear(W -> 1) + Sigmoid
        logit = jnp.dot(wd, h.astype(jnp.bfloat16),
                        preferred_element_type=jnp.float32) + bd   # (1, chunk)
        o_ref[:, pl.ds(col, chunk)] = (
            1.0 / (1.0 + jnp.exp(-logit))).astype(o_ref.dtype)
        return carry

    lax.fori_loop(0, n_chunks, body, 0, unroll=True)


def fardepth_forward(frustum_dists, params, *, tile_cols=2048, chunk=256):
    """frustum_dists: (..., DIM) float32  ->  (..., 1) float32."""
    assert tile_cols % chunk == 0 and chunk % 128 == 0

    lead_shape = frustum_dists.shape[:-1]
    x = frustum_dists.reshape(-1, DIM).astype(jnp.float32)
    n_rows = x.shape[0]

    # Feature-major layout: rows map to the 128-lane axis.
    xt = x.T                                            # (DIM, n_rows)

    # Clamp the tile for tiny inputs so we don't over-pad; keep it a multiple
    # of `chunk`.  For large inputs the default 2048-lane tile keeps the grid
    # length >= 2 (megacore-friendly on v7x) while amortizing per-step cost.
    tile_cols = max(chunk, min(tile_cols, pl.cdiv(n_rows, chunk) * chunk))

    pad = (-n_rows) % tile_cols
    if pad:
        xt = jnp.pad(xt, ((0, 0), (0, pad)))
    n_padded = xt.shape[1]
    grid = (n_padded // tile_cols,)

    w1, b1, w2, b2, w3, b3, wd, bd = params
    # bf16 operands for the MXU-heavy layers (f32 accumulation in-kernel).
    w2 = w2.astype(jnp.bfloat16)
    w3 = w3.astype(jnp.bfloat16)
    wd = wd.astype(jnp.bfloat16)

    const = lambda i: (0, 0)   # weights/biases: one constant resident block

    out = pl.pallas_call(
        functools.partial(_fardepth_kernel, chunk=chunk),
        out_shape=jax.ShapeDtypeStruct((1, n_padded), jnp.float32),
        grid_spec=pltpu.PrefetchScalarGridSpec(
            num_scalar_prefetch=0,
            grid=grid,
            in_specs=[
                pl.BlockSpec((DIM, tile_cols), lambda i: (0, i)),      # x tile
                pl.BlockSpec((W, DIM), const), pl.BlockSpec((W, 1), const),  # layer 1
                pl.BlockSpec((W, W), const),   pl.BlockSpec((W, 1), const),  # layer 2
                pl.BlockSpec((W, W), const),   pl.BlockSpec((W, 1), const),  # layer 3
                pl.BlockSpec((1, W), const),   pl.BlockSpec((1, 1), const),  # head
            ],
            out_specs=pl.BlockSpec((1, tile_cols), lambda i: (0, i)),
        ),
        compiler_params=pltpu.CompilerParams(
            dimension_semantics=("parallel",)),
    )(xt, w1, b1, w2, b2, w3, b3, wd, bd)

    out = out[0, :n_rows]
    return out.reshape(*lead_shape, 1)


def init_params(key):
    """Deterministic init matching PyTorch nn.Linear.

    Weights kept in PyTorch's (out_features, in_features) layout; biases as
    (out_features, 1) columns so the feature-major kernel broadcasts them over
    lanes directly.
    """
    ks = jax.random.split(key, 8)

    def linear(kw, kb, fan_in, fan_out):
        bound = 1.0 / jnp.sqrt(fan_in)
        w = jax.random.uniform(kw, (fan_out, fan_in), jnp.float32, -bound, bound)
        b = jax.random.uniform(kb, (fan_out, 1), jnp.float32, -bound, bound)
        return w, b

    w1, b1 = linear(ks[0], ks[1], DIM, W)
    w2, b2 = linear(ks[2], ks[3], W, W)
    w3, b3 = linear(ks[4], ks[5], W, W)
    wd, bd = linear(ks[6], ks[7], W, 1)
    return (w1, b1, w2, b2, w3, b3, wd, bd)


def fardepth_reference(frustum_dists, params):
    """Pure-JAX f32 reference of the PyTorch forward pass."""
    w1, b1, w2, b2, w3, b3, wd, bd = params
    h = jnp.maximum(frustum_dists @ w1.T + b1[:, 0], 0.0)
    h = jnp.maximum(h @ w2.T + b2[:, 0], 0.0)
    h = jnp.maximum(h @ w3.T + b3[:, 0], 0.0)
    return jax.nn.sigmoid(h @ wd.T + bd[:, 0])


if __name__ == "__main__":
    key = jax.random.PRNGKey(0)
    k_param, k_x = jax.random.split(key)

    params = init_params(k_param)

    # Small example: batch of 2, 128 frustum samples each, 6 distance features.
    frustum_dists = jax.random.normal(k_x, (2, 128, DIM), jnp.float32)

    fd = fardepth_forward(frustum_dists, params)
    fd = jax.block_until_ready(fd)

    ref = fardepth_reference(frustum_dists, params)
    assert fd.shape == (2, 128, 1), fd.shape
    # bf16 matmul operands (f32 accumulation) vs a pure-f32 reference:
    # observed error is ~1e-3 on a sigmoid output; 2e-2 gives ample margin.
    max_err = float(jnp.max(jnp.abs(fd - ref)))
    assert max_err < 2e-2, f"mismatch vs reference (max err {max_err})"

    print("KERNEL_OK")
</pallas_src>

<mosaic_0001>
module attributes {stable_mosaic.version = 11 : i64} {
  func.func @_fardepth_kernel(%arg0: i32, %arg1: memref<6x256xf32, #tpu.memory_space<vmem>>, %arg2: memref<64x6xf32, #tpu.memory_space<vmem>>, %arg3: memref<64x1xf32, #tpu.memory_space<vmem>>, %arg4: memref<64x64xbf16, #tpu.memory_space<vmem>>, %arg5: memref<64x1xf32, #tpu.memory_space<vmem>>, %arg6: memref<64x64xbf16, #tpu.memory_space<vmem>>, %arg7: memref<64x1xf32, #tpu.memory_space<vmem>>, %arg8: memref<1x64xbf16, #tpu.memory_space<vmem>>, %arg9: memref<1x1xf32, #tpu.memory_space<vmem>>, %arg10: memref<1x256xf32, #tpu.memory_space<vmem>>) attributes {dimension_semantics = [#tpu.dimension_semantics<parallel>], iteration_bounds = array<i64: 1>, scalar_prefetch = 0 : i64, scratch_operands = 0 : i64, tpu.core_type = #tpu.core_type<tc>, window_params = [{transform_indices = @transform_0, window_bounds = array<i64: 6, 256>}, {pipeline_mode = #tpu.pipeline_mode<synchronous>, transform_indices = @transform_1, window_bounds = array<i64: 64, 6>}, {pipeline_mode = #tpu.pipeline_mode<synchronous>, transform_indices = @transform_2, window_bounds = array<i64: 64, 1>}, {pipeline_mode = #tpu.pipeline_mode<synchronous>, transform_indices = @transform_3, window_bounds = array<i64: 64, 64>}, {pipeline_mode = #tpu.pipeline_mode<synchronous>, transform_indices = @transform_4, window_bounds = array<i64: 64, 1>}, {pipeline_mode = #tpu.pipeline_mode<synchronous>, transform_indices = @transform_5, window_bounds = array<i64: 64, 64>}, {pipeline_mode = #tpu.pipeline_mode<synchronous>, transform_indices = @transform_6, window_bounds = array<i64: 64, 1>}, {pipeline_mode = #tpu.pipeline_mode<synchronous>, transform_indices = @transform_7, window_bounds = array<i64: 1, 64>}, {pipeline_mode = #tpu.pipeline_mode<synchronous>, transform_indices = @transform_8, window_bounds = array<i64: 1, 1>}, {transform_indices = @transform_9, window_bounds = array<i64: 1, 256>}]} {
    %c0 = arith.constant 0 : index
    %c0_0 = arith.constant 0 : index
    %0 = vector.load %arg2[%c0, %c0_0] : memref<64x6xf32, #tpu.memory_space<vmem>>, vector<64x6xf32>
    %c0_1 = arith.constant 0 : index
    %c0_2 = arith.constant 0 : index
    %1 = vector.load %arg4[%c0_1, %c0_2] : memref<64x64xbf16, #tpu.memory_space<vmem>>, vector<64x64xbf16>
    %c0_3 = arith.constant 0 : index
    %c0_4 = arith.constant 0 : index
    %2 = vector.load %arg6[%c0_3, %c0_4] : memref<64x64xbf16, #tpu.memory_space<vmem>>, vector<64x64xbf16>
    %c0_5 = arith.constant 0 : index
    %c0_6 = arith.constant 0 : index
    %3 = vector.load %arg8[%c0_5, %c0_6] : memref<1x64xbf16, #tpu.memory_space<vmem>>, vector<1x64xbf16>
    %c0_7 = arith.constant 0 : index
    %c0_8 = arith.constant 0 : index
    %4 = vector.load %arg3[%c0_7, %c0_8] : memref<64x1xf32, #tpu.memory_space<vmem>>, vector<64x1xf32>
    %5 = vector.shape_cast %4 : vector<64x1xf32> to vector<64x1xf32>
    %6 = vector.broadcast %5 : vector<64x1xf32> to vector<64x256xf32>
    %c0_9 = arith.constant 0 : index
    %c0_10 = arith.constant 0 : index
    %7 = vector.load %arg5[%c0_9, %c0_10] : memref<64x1xf32, #tpu.memory_space<vmem>>, vector<64x1xf32>
    %8 = vector.shape_cast %7 : vector<64x1xf32> to vector<64x1xf32>
    %9 = vector.broadcast %8 : vector<64x1xf32> to vector<64x256xf32>
    %c0_11 = arith.constant 0 : index
    %c0_12 = arith.constant 0 : index
    %10 = vector.load %arg7[%c0_11, %c0_12] : memref<64x1xf32, #tpu.memory_space<vmem>>, vector<64x1xf32>
    %11 = vector.shape_cast %10 : vector<64x1xf32> to vector<64x1xf32>
    %12 = vector.broadcast %11 : vector<64x1xf32> to vector<64x256xf32>
    %c0_13 = arith.constant 0 : index
    %c0_14 = arith.constant 0 : index
    %13 = vector.load %arg9[%c0_13, %c0_14] : memref<1x1xf32, #tpu.memory_space<vmem>>, vector<1x1xf32>
    %14 = vector.shape_cast %13 : vector<1x1xf32> to vector<1x1xf32>
    %15 = vector.broadcast %14 : vector<1x1xf32> to vector<1x256xf32>
    %c0_i32 = arith.constant 0 : i32
    %c256_i32 = arith.constant 256 : i32
    %16 = arith.muli %c0_i32, %c256_i32 : i32
    %17 = tpu.assume_multiple %16, 256 : i32
    %c0_15 = arith.constant 0 : index
    %18 = arith.index_cast %17 : i32 to index
    %19 = vector.load %arg1[%c0_15, %18] : memref<6x256xf32, #tpu.memory_space<vmem>>, vector<6x256xf32>
    %cst = arith.constant dense<0.000000e+00> : vector<64x256xf32>
    %20 = tpu.matmul %0, %19, %cst {dimension_numbers = #tpu.dot_dimension_numbers<[1], [0], [0], [1], [0, 0, 1, 1], [], []>} : vector<64x6xf32>, vector<6x256xf32>, vector<64x256xf32> -> vector<64x256xf32>
    %21 = arith.addf %20, %6 : vector<64x256xf32>
    %cst_16 = arith.constant 0.000000e+00 : f32
    %22 = vector.broadcast %cst_16 : f32 to vector<64x256xf32>
    %23 = arith.maximumf %21, %22 : vector<64x256xf32>
    %24 = arith.truncf %23 : vector<64x256xf32> to vector<64x256xbf16>
    %cst_17 = arith.constant dense<0.000000e+00> : vector<64x256xf32>
    %25 = tpu.matmul %1, %24, %cst_17 {dimension_numbers = #tpu.dot_dimension_numbers<[1], [0], [0], [1], [0, 0, 1, 1], [], []>} : vector<64x64xbf16>, vector<64x256xbf16>, vector<64x256xf32> -> vector<64x256xf32>
    %26 = arith.addf %25, %9 : vector<64x256xf32>
    %cst_18 = arith.constant 0.000000e+00 : f32
    %27 = vector.broadcast %cst_18 : f32 to vector<64x256xf32>
    %28 = arith.maximumf %26, %27 : vector<64x256xf32>
    %29 = arith.truncf %28 : vector<64x256xf32> to vector<64x256xbf16>
    %cst_19 = arith.constant dense<0.000000e+00> : vector<64x256xf32>
    %30 = tpu.matmul %2, %29, %cst_19 {dimension_numbers = #tpu.dot_dimension_numbers<[1], [0], [0], [1], [0, 0, 1, 1], [], []>} : vector<64x64xbf16>, vector<64x256xbf16>, vector<64x256xf32> -> vector<64x256xf32>
    %31 = arith.addf %30, %12 : vector<64x256xf32>
    %cst_20 = arith.constant 0.000000e+00 : f32
    %32 = vector.broadcast %cst_20 : f32 to vector<64x256xf32>
    %33 = arith.maximumf %31, %32 : vector<64x256xf32>
    %34 = arith.truncf %33 : vector<64x256xf32> to vector<64x256xbf16>
    %cst_21 = arith.constant dense<0.000000e+00> : vector<1x256xf32>
    %35 = tpu.matmul %3, %34, %cst_21 {dimension_numbers = #tpu.dot_dimension_numbers<[1], [0], [0], [1], [0, 0, 1, 1], [], []>} : vector<1x64xbf16>, vector<64x256xbf16>, vector<1x256xf32> -> vector<1x256xf32>
    %36 = arith.addf %35, %15 : vector<1x256xf32>
    %cst_22 = arith.constant 0.000000e+00 : f32
    %37 = vector.broadcast %cst_22 : f32 to vector<1x256xf32>
    %38 = arith.subf %37, %36 : vector<1x256xf32>
    %39 = math.exp %38 : vector<1x256xf32>
    %cst_23 = arith.constant 1.000000e+00 : f32
    %40 = vector.broadcast %cst_23 : f32 to vector<1x256xf32>
    %41 = arith.addf %40, %39 : vector<1x256xf32>
    %cst_24 = arith.constant 1.000000e+00 : f32
    %42 = vector.broadcast %cst_24 : f32 to vector<1x256xf32>
    %43 = arith.divf %42, %41 : vector<1x256xf32>
    %c0_25 = arith.constant 0 : index
    %44 = arith.index_cast %17 : i32 to index
    %45 = vector.load %arg10[%c0_25, %44] : memref<1x256xf32, #tpu.memory_space<vmem>>, vector<1x256xf32>
    tpu.vector_store %arg10[%c0_25, %44], %43 {strides = array<i32>} : memref<1x256xf32, #tpu.memory_space<vmem>>, vector<1x256xf32>,
    %c1_i32 = arith.constant 1 : i32
    return
  }
  func.func @transform_0(%arg0: i32) -> (i32, i32) {
    %c0_i32 = arith.constant 0 : i32
    %c0_i32_0 = arith.constant 0 : i32
    return %c0_i32, %arg0 : i32, i32
  }
  func.func @transform_1(%arg0: i32) -> (i32, i32) {
    %c0_i32 = arith.constant 0 : i32
    %c0_i32_0 = arith.constant 0 : i32
    %c0_i32_1 = arith.constant 0 : i32
    return %c0_i32, %c0_i32_0 : i32, i32
  }
  func.func @transform_2(%arg0: i32) -> (i32, i32) {
    %c0_i32 = arith.constant 0 : i32
    %c0_i32_0 = arith.constant 0 : i32
    %c0_i32_1 = arith.constant 0 : i32
    return %c0_i32, %c0_i32_0 : i32, i32
  }
  func.func @transform_3(%arg0: i32) -> (i32, i32) {
    %c0_i32 = arith.constant 0 : i32
    %c0_i32_0 = arith.constant 0 : i32
    %c0_i32_1 = arith.constant 0 : i32
    return %c0_i32, %c0_i32_0 : i32, i32
  }
  func.func @transform_4(%arg0: i32) -> (i32, i32) {
    %c0_i32 = arith.constant 0 : i32
    %c0_i32_0 = arith.constant 0 : i32
    %c0_i32_1 = arith.constant 0 : i32
    return %c0_i32, %c0_i32_0 : i32, i32
  }
  func.func @transform_5(%arg0: i32) -> (i32, i32) {
    %c0_i32 = arith.constant 0 : i32
    %c0_i32_0 = arith.constant 0 : i32
    %c0_i32_1 = arith.constant 0 : i32
    return %c0_i32, %c0_i32_0 : i32, i32
  }
  func.func @transform_6(%arg0: i32) -> (i32, i32) {
    %c0_i32 = arith.constant 0 : i32
    %c0_i32_0 = arith.constant 0 : i32
    %c0_i32_1 = arith.constant 0 : i32
    return %c0_i32, %c0_i32_0 : i32, i32
  }
  func.func @transform_7(%arg0: i32) -> (i32, i32) {
    %c0_i32 = arith.constant 0 : i32
    %c0_i32_0 = arith.constant 0 : i32
    %c0_i32_1 = arith.constant 0 : i32
    return %c0_i32, %c0_i32_0 : i32, i32
  }
  func.func @transform_8(%arg0: i32) -> (i32, i32) {
    %c0_i32 = arith.constant 0 : i32
    %c0_i32_0 = arith.constant 0 : i32
    %c0_i32_1 = arith.constant 0 : i32
    return %c0_i32, %c0_i32_0 : i32, i32
  }
  func.func @transform_9(%arg0: i32) -> (i32, i32) {
    %c0_i32 = arith.constant 0 : i32
    %c0_i32_0 = arith.constant 0 : i32
    return %c0_i32, %arg0 : i32, i32
  }
}

</mosaic_0001>

<llo_original>
// kernel: tpu_custom_call.1
$region0: #{tpu_custom_call.1}
  #allocation0 [shape = 'u32[]', space=smem, size = 0x4, offset = 0x4, fixed_abs, tag = 'smem constant byte address 0x4 - core index']
  #allocation1 [shape = 'u32[72,128]{1,0:T(1,128)}', space=vmem, size = 0x9000, scoped, tag = 'internal scratch']
  #allocation2 [shape = 'f32[1,1]{1,0:T(1,128)S(1)}', space=vmem, size = 0x200, scoped, tag = 'scoped memory for tpu_custom_call.1']
  %s0 = inlined_call_operand.vmem [shape: f32[6,256], index: 0, kind: input, shape index: {}]
  %s1 = inlined_call_operand.vmem [shape: f32[64,6], index: 1, kind: input, shape index: {}]
  %s2 = inlined_call_operand.vmem [shape: f32[64,1], index: 2, kind: input, shape index: {}]
  %s3 = inlined_call_operand.vmem [shape: bf16[64,64], index: 3, kind: input, shape index: {}]
  %s4 = inlined_call_operand.vmem [shape: f32[64,1], index: 4, kind: input, shape index: {}]
  %s5 = inlined_call_operand.vmem [shape: bf16[64,64], index: 5, kind: input, shape index: {}]
  %s6 = inlined_call_operand.vmem [shape: f32[64,1], index: 6, kind: input, shape index: {}]
  %s7 = inlined_call_operand.vmem [shape: bf16[1,64], index: 7, kind: input, shape index: {}]
  %s8 = inlined_call_operand.<no memory space> [shape: f32[1,1], index: 8, kind: input, shape index: {}]
  %s9 = inlined_call_operand.hbm [shape: f32[1,256], index: 9, kind: output, shape index: {}]
  %s10 = sld [smem:[#allocation0]]
  $region46: #{tpu_custom_call.1} parent=0
    _
  %s12 = ssub.s32 1, %s10
  %s13 = scalar_select 0, %s12, %s10
  %v14 = vstv %s8
  %15 = vst [vmem:[#allocation2] sm:$0x1] %v14
  $region1: #{tpu_custom_call.1} parent=0
    #allocation3 [shape = 'u8[1024]{0}', space=vmem, size = 0x400, scoped, tag = 'output window, operand 0, single buffered']
    #allocation4 [shape = 's32[1]{0}', space=sflag, size = 0x4, scoped, tag = 'scoped memory for tpu_custom_call.1']
    %16 = vsyncpa [#allocation4], 0
    // Predicated region
    $region2: #{tpu_custom_call.1} parent=1 // pred_check
      _
    $region3: #{tpu_custom_call.1} parent=1 // pred_check_branch
      %18 = sbr.rel (0) target = $region5
    $region4: #{tpu_custom_call.1} parent=1 // pred_region
      _
    $region5: #{tpu_custom_call.1} parent=1 // pred_fallthru
      _
    // Predicated region
    $region6: #{tpu_custom_call.1} parent=1 // pred_check
      _
    $region7: #{tpu_custom_call.1} parent=1 // pred_check_branch
      %20 = sbr.rel (0) target = $region9
    $region8: #{tpu_custom_call.1} parent=1 // pred_region
      _
    $region9: #{tpu_custom_call.1} parent=1 // pred_fallthru
      _
    // Predicated region
    $region10: #{tpu_custom_call.1} parent=1 // pred_check
      _
    $region11: #{tpu_custom_call.1} parent=1 // pred_check_branch
      %22 = sbr.rel (0) target = $region13
    $region12: #{tpu_custom_call.1} parent=1 // pred_region
      _
    $region13: #{tpu_custom_call.1} parent=1 // pred_fallthru
      _
    // Predicated region
    $region14: #{tpu_custom_call.1} parent=1 // pred_check
      _
    $region15: #{tpu_custom_call.1} parent=1 // pred_check_branch
      %24 = sbr.rel (0) target = $region17
    $region16: #{tpu_custom_call.1} parent=1 // pred_region
      _
    $region17: #{tpu_custom_call.1} parent=1 // pred_fallthru
      _
    // Predicated region
    $region18: #{tpu_custom_call.1} parent=1 // pred_check
      _
    $region19: #{tpu_custom_call.1} parent=1 // pred_check_branch
      %26 = sbr.rel (0) target = $region21
    $region20: #{tpu_custom_call.1} parent=1 // pred_region
      _
    $region21: #{tpu_custom_call.1} parent=1 // pred_fallthru
      _
    // Predicated region
    $region22: #{tpu_custom_call.1} parent=1 // pred_check
      _
    $region23: #{tpu_custom_call.1} parent=1 // pred_check_branch
      %28 = sbr.rel (0) target = $region25
    $region24: #{tpu_custom_call.1} parent=1 // pred_region
      _
    $region25: #{tpu_custom_call.1} parent=1 // pred_fallthru
      _
    // Predicated region
    $region26: #{tpu_custom_call.1} parent=1 // pred_check
      _
    $region27: #{tpu_custom_call.1} parent=1 // pred_check_branch
      %30 = sbr.rel (0) target = $region29
    $region28: #{tpu_custom_call.1} parent=1 // pred_region
      _
    $region29: #{tpu_custom_call.1} parent=1 // pred_fallthru
      _
    // Predicated region
    $region30: #{tpu_custom_call.1} parent=1 // pred_check
      _
    $region31: #{tpu_custom_call.1} parent=1 // pred_check_branch
      %32 = sbr.rel (0) target = $region33
    $region32: #{tpu_custom_call.1} parent=1 // pred_region
      _
    $region33: #{tpu_custom_call.1} parent=1 // pred_fallthru
      _
    // Predicated region
    $region34: #{tpu_custom_call.1} parent=1 // pred_check
      _
    $region35: #{tpu_custom_call.1} parent=1 // pred_check_branch
      %34 = sbr.rel (0) target = $region37
    $region36: #{tpu_custom_call.1} parent=1 // pred_region
      _
    $region37: #{tpu_custom_call.1} parent=1 // pred_fallthru
      _
    %v36 = vld [vmem:[%s1] sm:$0xff]
    %v37 = vld [vmem:[%s1 + $0x8] sm:$0xff]
    %v38 = vld [vmem:[%s1 + $0x10] sm:$0xff]
    %v39 = vld [vmem:[%s1 + $0x18] sm:$0xff]
    %v40 = vld [vmem:[%s1 + $0x20] sm:$0xff]
    %v41 = vld [vmem:[%s1 + $0x28] sm:$0xff]
    %v42 = vld [vmem:[%s1 + $0x30] sm:$0xff]
    %v43 = vld [vmem:[%s1 + $0x38] sm:$0xff]
    %v44 = vld [vmem:[%s3] sm:$0xf]
    %v45 = vld [vmem:[%s3 + $0x4] sm:$0xf]
    %v46 = vld [vmem:[%s3 + $0x8] sm:$0xf]
    %v47 = vld [vmem:[%s3 + $0xc] sm:$0xf]
    %v48 = vld [vmem:[%s3 + $0x10] sm:$0xf]
    %v49 = vld [vmem:[%s3 + $0x14] sm:$0xf]
    %v50 = vld [vmem:[%s3 + $0x18] sm:$0xf]
    %v51 = vld [vmem:[%s3 + $0x1c] sm:$0xf]
    %v52 = vld [vmem:[%s5] sm:$0xf]
    %v53 = vld [vmem:[%s5 + $0x4] sm:$0xf]
    %v54 = vld [vmem:[%s5 + $0x8] sm:$0xf]
    %v55 = vld [vmem:[%s5 + $0xc] sm:$0xf]
    %v56 = vld [vmem:[%s5 + $0x10] sm:$0xf]
    %v57 = vld [vmem:[%s5 + $0x14] sm:$0xf]
    %v58 = vld [vmem:[%s5 + $0x18] sm:$0xf]
    %v59 = vld [vmem:[%s5 + $0x1c] sm:$0xf]
    %v60 = vld [vmem:[%s7] sm:$0x1]
    %v61 = vld [vmem:[%s2] sm:$0xff]
    %v62 = vld [vmem:[%s2 + $0x8] sm:$0xff]
    %v63 = vld [vmem:[%s2 + $0x10] sm:$0xff]
    %v64 = vld [vmem:[%s2 + $0x18] sm:$0xff]
    %v65 = vld [vmem:[%s2 + $0x20] sm:$0xff]
    %v66 = vld [vmem:[%s2 + $0x28] sm:$0xff]
    %v67 = vld [vmem:[%s2 + $0x30] sm:$0xff]
    %v68 = vld [vmem:[%s2 + $0x38] sm:$0xff]
    %70 = vset.pattern.permute.xlu0 0
    %71 = vperm.xlu0 %70, %v61
    %v72 = vpop.permute.xlu0 %71
    %75 = vset.pattern.permute.xlu0 0
    %76 = vperm.xlu0 %75, %v62
    %v77 = vpop.permute.xlu0 %76
    %80 = vset.pattern.permute.xlu0 0
    %81 = vperm.xlu0 %80, %v63
    %v82 = vpop.permute.xlu0 %81
    %85 = vset.pattern.permute.xlu0 0
    %86 = vperm.xlu0 %85, %v64
    %v87 = vpop.permute.xlu0 %86
    %90 = vset.pattern.permute.xlu0 0
    %91 = vperm.xlu0 %90, %v65
    %v92 = vpop.permute.xlu0 %91
    %95 = vset.pattern.permute.xlu0 0
    %96 = vperm.xlu0 %95, %v66
    %v97 = vpop.permute.xlu0 %96
    %100 = vset.pattern.permute.xlu0 0
    %101 = vperm.xlu0 %100, %v67
    %v102 = vpop.permute.xlu0 %101
    %105 = vset.pattern.permute.xlu0 0
    %106 = vperm.xlu0 %105, %v68
    %v107 = vpop.permute.xlu0 %106
    %v109 = vld [vmem:[%s4] sm:$0xff]
    %v110 = vld [vmem:[%s4 + $0x8] sm:$0xff]
    %v111 = vld [vmem:[%s4 + $0x10] sm:$0xff]
    %v112 = vld [vmem:[%s4 + $0x18] sm:$0xff]
    %v113 = vld [vmem:[%s4 + $0x20] sm:$0xff]
    %v114 = vld [vmem:[%s4 + $0x28] sm:$0xff]
    %v115 = vld [vmem:[%s4 + $0x30] sm:$0xff]
    %v116 = vld [vmem:[%s4 + $0x38] sm:$0xff]
    %118 = vset.pattern.permute.xlu0 0
    %119 = vperm.xlu0 %118, %v109
    %v120 = vpop.permute.xlu0 %119
    %123 = vset.pattern.permute.xlu0 0
    %124 = vperm.xlu0 %123, %v110
    %v125 = vpop.permute.xlu0 %124
    %128 = vset.pattern.permute.xlu0 0
    %129 = vperm.xlu0 %128, %v111
    %v130 = vpop.permute.xlu0 %129
    %133 = vset.pattern.permute.xlu0 0
    %134 = vperm.xlu0 %133, %v112
    %v135 = vpop.permute.xlu0 %134
    %138 = vset.pattern.permute.xlu0 0
    %139 = vperm.xlu0 %138, %v113
    %v140 = vpop.permute.xlu0 %139
    %143 = vset.pattern.permute.xlu0 0
    %144 = vperm.xlu0 %143, %v114
    %v145 = vpop.permute.xlu0 %144
    %148 = vset.pattern.permute.xlu0 0
    %149 = vperm.xlu0 %148, %v115
    %v150 = vpop.permute.xlu0 %149
    %153 = vset.pattern.permute.xlu0 0
    %154 = vperm.xlu0 %153, %v116
    %v155 = vpop.permute.xlu0 %154
    %v157 = vld [vmem:[%s6] sm:$0xff]
    %v158 = vld [vmem:[%s6 + $0x8] sm:$0xff]
    %v159 = vld [vmem:[%s6 + $0x10] sm:$0xff]
    %v160 = vld [vmem:[%s6 + $0x18] sm:$0xff]
    %v161 = vld [vmem:[%s6 + $0x20] sm:$0xff]
    %v162 = vld [vmem:[%s6 + $0x28] sm:$0xff]
    %v163 = vld [vmem:[%s6 + $0x30] sm:$0xff]
    %v164 = vld [vmem:[%s6 + $0x38] sm:$0xff]
    %166 = vset.pattern.permute.xlu0 0
    %167 = vperm.xlu0 %166, %v157
    %v168 = vpop.permute.xlu0 %167
    %171 = vset.pattern.permute.xlu0 0
    %172 = vperm.xlu0 %171, %v158
    %v173 = vpop.permute.xlu0 %172
    %176 = vset.pattern.permute.xlu0 0
    %177 = vperm.xlu0 %176, %v159
    %v178 = vpop.permute.xlu0 %177
    %181 = vset.pattern.permute.xlu0 0
    %182 = vperm.xlu0 %181, %v160
    %v183 = vpop.permute.xlu0 %182
    %186 = vset.pattern.permute.xlu0 0
    %187 = vperm.xlu0 %186, %v161
    %v188 = vpop.permute.xlu0 %187
    %191 = vset.pattern.permute.xlu0 0
    %192 = vperm.xlu0 %191, %v162
    %v193 = vpop.permute.xlu0 %192
    %196 = vset.pattern.permute.xlu0 0
    %197 = vperm.xlu0 %196, %v163
    %v198 = vpop.permute.xlu0 %197
    %201 = vset.pattern.permute.xlu0 0
    %202 = vperm.xlu0 %201, %v164
    %v203 = vpop.permute.xlu0 %202
    %v205 = vld [vmem:[#allocation2] sm:$0x1]
    %207 = vset.pattern.permute.xlu0 0
    %208 = vperm.xlu0 %207, %v205
    %v209 = vpop.permute.xlu0 %208
    %v211 = vperm.slane %v209, 0
    %v212 = vld [vmem:[%s0] sm:$0x3f]
    %v213 = vld [vmem:[%s0 + $0x8] sm:$0x3f]
    %vm214 = vcmask 48128
    %v216 = vsel %vm214, %v36, 0
    %v219 = vsel %vm214, %v37, 0
    %v222 = vsel %vm214, %v38, 0
    %v225 = vsel %vm214, %v39, 0
    %v228 = vsel %vm214, %v40, 0
    %v231 = vsel %vm214, %v41, 0
    %v234 = vsel %vm214, %v42, 0
    %v237 = vsel %vm214, %v43, 0
    %vm239 = vcmask 1045504
    %v241 = vsel %vm239, %v212, 0
    %v244 = vsel %vm239, %v213, 0
    %246 = vmatpush.msra.mxu0 0.0
    %247 = vmatpush.msra.mxu0 0.0
    %248 = vmatpush.msra.mxu0 0.0
    %249 = vmatpush.msra.mxu0 0.0
    %250 = vmatpush.msra.mxu0 0.0
    %251 = vmatpush.msra.mxu0 0.0
    %252 = vmatpush.msra.mxu0 0.0
    %253 = vmatpush.msra.mxu0 0.0
    %254 = vmatpush.msra.mxu0 0.0
    %255 = vmatpush.msra.mxu0 0.0
    %256 = vmatpush.msra.mxu0 0.0
    %257 = vmatpush.msra.mxu0 0.0
    %258 = vmatpush.msra.mxu0 0.0
    %259 = vmatpush.msra.mxu0 0.0
    %260 = vmatpush.msra.mxu0 0.0
    %261 = vmatpush.msra.mxu0 %v241
    %262 = vmatmul.f32.gmra.mxu0 %v216
    %v263 = vpop.f32.mrf.mxu0
    %v264 = vadd.f32 %v72, %v263
    %265 = vmatmul.f32.gmra.mxu0 %v219
    %v266 = vpop.f32.mrf.mxu0
    %v267 = vadd.f32 %v77, %v266
    %268 = vmatmul.f32.gmra.mxu0 %v222
    %v269 = vpop.f32.mrf.mxu0
    %v270 = vadd.f32 %v82, %v269
    %271 = vmatmul.f32.gmra.mxu0 %v225
    %v272 = vpop.f32.mrf.mxu0
    %v273 = vadd.f32 %v87, %v272
    %274 = vmatmul.f32.gmra.mxu0 %v228
    %v275 = vpop.f32.mrf.mxu0
    %v276 = vadd.f32 %v92, %v275
    %277 = vmatmul.f32.gmra.mxu0 %v231
    %v278 = vpop.f32.mrf.mxu0
    %v279 = vadd.f32 %v97, %v278
    %280 = vmatmul.f32.gmra.mxu0 %v234
    %v281 = vpop.f32.mrf.mxu0
    %v282 = vadd.f32 %v102, %v281
    %283 = vmatmul.f32.gmra.mxu0 %v237
    %v284 = vpop.f32.mrf.mxu0
    %v285 = vadd.f32 %v107, %v284
    %286 = vdwg.mxu0
    %287 = vmatpush.msra.mxu0 0.0
    %288 = vmatpush.msra.mxu0 0.0
    %289 = vmatpush.msra.mxu0 0.0
    %290 = vmatpush.msra.mxu0 0.0
    %291 = vmatpush.msra.mxu0 0.0
    %292 = vmatpush.msra.mxu0 0.0
    %293 = vmatpush.msra.mxu0 0.0
    %294 = vmatpush.msra.mxu0 0.0
    %295 = vmatpush.msra.mxu0 0.0
    %296 = vmatpush.msra.mxu0 0.0
    %297 = vmatpush.msra.mxu0 0.0
    %298 = vmatpush.msra.mxu0 0.0
    %299 = vmatpush.msra.mxu0 0.0
    %300 = vmatpush.msra.mxu0 0.0
    %301 = vmatpush.msra.mxu0 0.0
    %302 = vmatpush.msra.mxu0 %v244
    %303 = vmatmul.f32.gmra.mxu0 %v216
    %v304 = vpop.f32.mrf.mxu0
    %v305 = vadd.f32 %v72, %v304
    %306 = vmatmul.f32.gmra.mxu0 %v219
    %v307 = vpop.f32.mrf.mxu0
    %v308 = vadd.f32 %v77, %v307
    %309 = vmatmul.f32.gmra.mxu0 %v222
    %v310 = vpop.f32.mrf.mxu0
    %v311 = vadd.f32 %v82, %v310
    %312 = vmatmul.f32.gmra.mxu0 %v225
    %v313 = vpop.f32.mrf.mxu0
    %v314 = vadd.f32 %v87, %v313
    %315 = vmatmul.f32.gmra.mxu0 %v228
    %v316 = vpop.f32.mrf.mxu0
    %v317 = vadd.f32 %v92, %v316
    %318 = vmatmul.f32.gmra.mxu0 %v231
    %v319 = vpop.f32.mrf.mxu0
    %v320 = vadd.f32 %v97, %v319
    %321 = vmatmul.f32.gmra.mxu0 %v234
    %v322 = vpop.f32.mrf.mxu0
    %v323 = vadd.f32 %v102, %v322
    %324 = vmatmul.f32.gmra.mxu0 %v237
    %v325 = vpop.f32.mrf.mxu0
    %v326 = vadd.f32 %v107, %v325
    %327 = vdwg.mxu0
    %v328 = vmax.f32 %v264, 0.0
    %v329 = vmax.f32 %v305, 0.0
    %v330 = vmax.f32 %v267, 0.0
    %v331 = vmax.f32 %v308, 0.0
    %v332 = vmax.f32 %v270, 0.0
    %v333 = vmax.f32 %v311, 0.0
    %v334 = vmax.f32 %v273, 0.0
    %v335 = vmax.f32 %v314, 0.0
    %v336 = vmax.f32 %v276, 0.0
    %v337 = vmax.f32 %v317, 0.0
    %v338 = vmax.f32 %v279, 0.0
    %v339 = vmax.f32 %v320, 0.0
    %v340 = vmax.f32 %v282, 0.0
    %v341 = vmax.f32 %v323, 0.0
    %v342 = vmax.f32 %v285, 0.0
    %v343 = vmax.f32 %v326, 0.0
    %v344 = vpack.c.bf16 %v330, %v328
    %v345 = vpack.c.bf16 %v331, %v329
    %v346 = vpack.c.bf16 %v334, %v332
    %v347 = vpack.c.bf16 %v335, %v333
    %v348 = vpack.c.bf16 %v338, %v336
    %v349 = vpack.c.bf16 %v339, %v337
    %v350 = vpack.c.bf16 %v342, %v340
    %v351 = vpack.c.bf16 %v343, %v341
    %v360 = vunpack.c.l.b16 %v44
    %v361 = vunpack.c.l.b16 %v45
    %v362 = vunpack.c.l.b16 %v46
    %v363 = vunpack.c.l.b16 %v47
    %v364 = vunpack.c.l.b16 %v48
    %v365 = vunpack.c.l.b16 %v49
    %v366 = vunpack.c.l.b16 %v50
    %v367 = vunpack.c.l.b16 %v51
    %v368 = vpack.c.b16 %v361, %v360
    %v369 = vpack.c.b16 %v363, %v362
    %v370 = vpack.c.b16 %v365, %v364
    %v371 = vpack.c.b16 %v367, %v366
    %vm372 = vcmask 523264
    %v374 = vsel %vm372, %v368, 0
    %v377 = vsel %vm372, %v369, 0
    %v380 = vsel %vm372, %v370, 0
    %v383 = vsel %vm372, %v371, 0
    %385 = vmatpush.bf16.msra.mxu0 0
    %386 = vmatpush.bf16.msra.mxu0 0
    %387 = vmatpush.bf16.msra.mxu0 0
    %388 = vmatpush.bf16.msra.mxu0 0
    %389 = vmatpush.bf16.msra.mxu0 %v350
    %390 = vmatpush.bf16.msra.mxu0 %v348
    %391 = vmatpush.bf16.msra.mxu0 %v346
    %392 = vmatpush.bf16.msra.mxu0 %v344
    %393 = vmatmul.bf16.gmra.mxu0 %v374
    %v394 = vpop.f32.mrf.mxu0
    %v395 = vadd.f32 %v120, %v394
    %v396 = vpop.f32.mrf.mxu0
    %v397 = vadd.f32 %v125, %v396
    %398 = vmatmul.bf16.gmra.mxu0 %v377
    %v399 = vpop.f32.mrf.mxu0
    %v400 = vadd.f32 %v130, %v399
    %v401 = vpop.f32.mrf.mxu0
    %v402 = vadd.f32 %v135, %v401
    %403 = vmatmul.bf16.gmra.mxu0 %v380
    %v404 = vpop.f32.mrf.mxu0
    %v405 = vadd.f32 %v140, %v404
    %v406 = vpop.f32.mrf.mxu0
    %v407 = vadd.f32 %v145, %v406
    %408 = vmatmul.bf16.gmra.mxu0 %v383
    %v409 = vpop.f32.mrf.mxu0
    %v410 = vadd.f32 %v150, %v409
    %v411 = vpop.f32.mrf.mxu0
    %v412 = vadd.f32 %v155, %v411
    %413 = vdwg.mxu0
    %414 = vmatpush.bf16.msra.mxu0 0
    %415 = vmatpush.bf16.msra.mxu0 0
    %416 = vmatpush.bf16.msra.mxu0 0
    %417 = vmatpush.bf16.msra.mxu0 0
    %418 = vmatpush.bf16.msra.mxu0 %v351
    %419 = vmatpush.bf16.msra.mxu0 %v349
    %420 = vmatpush.bf16.msra.mxu0 %v347
    %421 = vmatpush.bf16.msra.mxu0 %v345
    %422 = vmatmul.bf16.gmra.mxu0 %v374
    %v423 = vpop.f32.mrf.mxu0
    %v424 = vadd.f32 %v120, %v423
    %v425 = vpop.f32.mrf.mxu0
    %v426 = vadd.f32 %v125, %v425
    %427 = vmatmul.bf16.gmra.mxu0 %v377
    %v428 = vpop.f32.mrf.mxu0
    %v429 = vadd.f32 %v130, %v428
    %v430 = vpop.f32.mrf.mxu0
    %v431 = vadd.f32 %v135, %v430
    %432 = vmatmul.bf16.gmra.mxu0 %v380
    %v433 = vpop.f32.mrf.mxu0
    %v434 = vadd.f32 %v140, %v433
    %v435 = vpop.f32.mrf.mxu0
    %v436 = vadd.f32 %v145, %v435
    %437 = vmatmul.bf16.gmra.mxu0 %v383
    %v438 = vpop.f32.mrf.mxu0
    %v439 = vadd.f32 %v150, %v438
    %v440 = vpop.f32.mrf.mxu0
    %v441 = vadd.f32 %v155, %v440
    %442 = vdwg.mxu0
    %v443 = vmax.f32 %v395, 0.0
    %v444 = vmax.f32 %v424, 0.0
    %v445 = vmax.f32 %v397, 0.0
    %v446 = vmax.f32 %v426, 0.0
    %v447 = vmax.f32 %v400, 0.0
    %v448 = vmax.f32 %v429, 0.0
    %v449 = vmax.f32 %v402, 0.0
    %v450 = vmax.f32 %v431, 0.0
    %v451 = vmax.f32 %v405, 0.0
    %v452 = vmax.f32 %v434, 0.0
    %v453 = vmax.f32 %v407, 0.0
    %v454 = vmax.f32 %v436, 0.0
    %v455 = vmax.f32 %v410, 0.0
    %v456 = vmax.f32 %v439, 0.0
    %v457 = vmax.f32 %v412, 0.0
    %v458 = vmax.f32 %v441, 0.0
    %v459 = vpack.c.bf16 %v445, %v443
    %v460 = vpack.c.bf16 %v446, %v444
    %v461 = vpack.c.bf16 %v449, %v447
    %v462 = vpack.c.bf16 %v450, %v448
    %v463 = vpack.c.bf16 %v453, %v451
    %v464 = vpack.c.bf16 %v454, %v452
    %v465 = vpack.c.bf16 %v457, %v455
    %v466 = vpack.c.bf16 %v458, %v456
    %v475 = vunpack.c.l.b16 %v52
    %v476 = vunpack.c.l.b16 %v53
    %v477 = vunpack.c.l.b16 %v54
    %v478 = vunpack.c.l.b16 %v55
    %v479 = vunpack.c.l.b16 %v56
    %v480 = vunpack.c.l.b16 %v57
    %v481 = vunpack.c.l.b16 %v58
    %v482 = vunpack.c.l.b16 %v59
    %v483 = vpack.c.b16 %v476, %v475
    %v484 = vpack.c.b16 %v478, %v477
    %v485 = vpack.c.b16 %v480, %v479
    %v486 = vpack.c.b16 %v482, %v481
    %v488 = vsel %vm372, %v483, 0
    %v491 = vsel %vm372, %v484, 0
    %v494 = vsel %vm372, %v485, 0
    %v497 = vsel %vm372, %v486, 0
    %499 = vmatpush.bf16.msra.mxu0 0
    %500 = vmatpush.bf16.msra.mxu0 0
    %501 = vmatpush.bf16.msra.mxu0 0
    %502 = vmatpush.bf16.msra.mxu0 0
    %503 = vmatpush.bf16.msra.mxu0 %v465
    %504 = vmatpush.bf16.msra.mxu0 %v463
    %505 = vmatpush.bf16.msra.mxu0 %v461
    %506 = vmatpush.bf16.msra.mxu0 %v459
    %507 = vmatmul.bf16.gmra.mxu0 %v488
    %v508 = vpop.f32.mrf.mxu0
    %v509 = vadd.f32 %v168, %v508
    %v510 = vpop.f32.mrf.mxu0
    %v511 = vadd.f32 %v173, %v510
    %512 = vmatmul.bf16.gmra.mxu0 %v491
    %v513 = vpop.f32.mrf.mxu0
    %v514 = vadd.f32 %v178, %v513
    %v515 = vpop.f32.mrf.mxu0
    %v516 = vadd.f32 %v183, %v515
    %517 = vmatmul.bf16.gmra.mxu0 %v494
    %v518 = vpop.f32.mrf.mxu0
    %v519 = vadd.f32 %v188, %v518
    %v520 = vpop.f32.mrf.mxu0
    %v521 = vadd.f32 %v193, %v520
    %522 = vmatmul.bf16.gmra.mxu0 %v497
    %v523 = vpop.f32.mrf.mxu0
    %v524 = vadd.f32 %v198, %v523
    %v525 = vpop.f32.mrf.mxu0
    %v526 = vadd.f32 %v203, %v525
    %527 = vdwg.mxu0
    %528 = vmatpush.bf16.msra.mxu0 0
    %529 = vmatpush.bf16.msra.mxu0 0
    %530 = vmatpush.bf16.msra.mxu0 0
    %531 = vmatpush.bf16.msra.mxu0 0
    %532 = vmatpush.bf16.msra.mxu0 %v466
    %533 = vmatpush.bf16.msra.mxu0 %v464
    %534 = vmatpush.bf16.msra.mxu0 %v462
    %535 = vmatpush.bf16.msra.mxu0 %v460
    %536 = vmatmul.bf16.gmra.mxu0 %v488
    %v537 = vpop.f32.mrf.mxu0
    %v538 = vadd.f32 %v168, %v537
    %v539 = vpop.f32.mrf.mxu0
    %v540 = vadd.f32 %v173, %v539
    %541 = vmatmul.bf16.gmra.mxu0 %v491
    %v542 = vpop.f32.mrf.mxu0
    %v543 = vadd.f32 %v178, %v542
    %v544 = vpop.f32.mrf.mxu0
    %v545 = vadd.f32 %v183, %v544
    %546 = vmatmul.bf16.gmra.mxu0 %v494
    %v547 = vpop.f32.mrf.mxu0
    %v548 = vadd.f32 %v188, %v547
    %v549 = vpop.f32.mrf.mxu0
    %v550 = vadd.f32 %v193, %v549
    %551 = vmatmul.bf16.gmra.mxu0 %v497
    %v552 = vpop.f32.mrf.mxu0
    %v553 = vadd.f32 %v198, %v552
    %v554 = vpop.f32.mrf.mxu0
    %v555 = vadd.f32 %v203, %v554
    %556 = vdwg.mxu0
    %v557 = vmax.f32 %v509, 0.0
    %v558 = vmax.f32 %v538, 0.0
    %v559 = vmax.f32 %v511, 0.0
    %v560 = vmax.f32 %v540, 0.0
    %v561 = vmax.f32 %v514, 0.0
    %v562 = vmax.f32 %v543, 0.0
    %v563 = vmax.f32 %v516, 0.0
    %v564 = vmax.f32 %v545, 0.0
    %v565 = vmax.f32 %v519, 0.0
    %v566 = vmax.f32 %v548, 0.0
    %v567 = vmax.f32 %v521, 0.0
    %v568 = vmax.f32 %v550, 0.0
    %v569 = vmax.f32 %v524, 0.0
    %v570 = vmax.f32 %v553, 0.0
    %v571 = vmax.f32 %v526, 0.0
    %v572 = vmax.f32 %v555, 0.0
    %v573 = vpack.c.bf16 %v559, %v557
    %v574 = vpack.c.bf16 %v560, %v558
    %v575 = vpack.c.bf16 %v563, %v561
    %v576 = vpack.c.bf16 %v564, %v562
    %v577 = vpack.c.bf16 %v567, %v565
    %v578 = vpack.c.bf16 %v568, %v566
    %v579 = vpack.c.bf16 %v571, %v569
    %v580 = vpack.c.bf16 %v572, %v570
    %v582 = vsel %vm372, %v60, 0
    %584 = vmatpush.bf16.msra.mxu0 0
    %585 = vmatpush.bf16.msra.mxu0 0
    %586 = vmatpush.bf16.msra.mxu0 0
    %587 = vmatpush.bf16.msra.mxu0 0
    %588 = vmatpush.bf16.msra.mxu0 %v579
    %589 = vmatpush.bf16.msra.mxu0 %v577
    %590 = vmatpush.bf16.msra.mxu0 %v575
    %591 = vmatpush.bf16.msra.mxu0 %v573
    %592 = vmatmul.bf16.gmra.mxu0 %v582
    %v593 = vpop.f32.mrf.mxu0
    %v594 = vadd.f32 %v211, %v593
    %v595 = vpop.f32.mrf.mxu0
    %596 = vdwg.mxu0
    %597 = vmatpush.bf16.msra.mxu0 0
    %598 = vmatpush.bf16.msra.mxu0 0
    %599 = vmatpush.bf16.msra.mxu0 0
    %600 = vmatpush.bf16.msra.mxu0 0
    %601 = vmatpush.bf16.msra.mxu0 %v580
    %602 = vmatpush.bf16.msra.mxu0 %v578
    %603 = vmatpush.bf16.msra.mxu0 %v576
    %604 = vmatpush.bf16.msra.mxu0 %v574
    %605 = vmatmul.bf16.gmra.mxu0 %v582
    %v606 = vpop.f32.mrf.mxu0
    %v607 = vadd.f32 %v211, %v606
    %v608 = vpop.f32.mrf.mxu0
    %609 = vdwg.mxu0
    %v610 = vsub.f32 0.0, %v594
    %v611 = vsub.f32 0.0, %v607
    %v612 = vmul.f32 %v610, 1.442695
    %v613 = vpow.pop %v612
    %v614 = vmul.f32 %v611, 1.442695
    %v615 = vpow.pop %v614
    %v616 = vadd.f32 %v613, 1.0
    %v617 = vadd.f32 %v615, 1.0
    %v618 = vrcp.pop %v616
    %v619 = vmul.f32 %v616, %v618
    %v620 = vsub.f32 1.0, %v619
    %v621 = vmul.f32 %v618, %v620
    %v622 = vadd.f32 %v618, %v621
    %vm623 = vweird.f32 %v616
    %vm624 = vweird.f32 %v618
    %vm625 = vmor %vm623, %vm624
    %v626 = vsel %vm625, %v618, %v622
    %v627 = vand.u32 2147483647, %v616
    %vm628 = vcmp.eq.f32.partialorder %v627, 8.507059e+37
    %v629 = vand.u32 %v616, 2147483648
    %v630 = vor.u32 1.1754944e-38, %v629
    %v631 = vsel %vm628, %v630, %v626
    %v632 = vmul.f32 1.0, %v631
    %v633 = vrcp.pop %v617
    %v634 = vmul.f32 %v617, %v633
    %v635 = vsub.f32 1.0, %v634
    %v636 = vmul.f32 %v633, %v635
    %v637 = vadd.f32 %v633, %v636
    %vm638 = vweird.f32 %v617
    %vm639 = vweird.f32 %v633
    %vm640 = vmor %vm638, %vm639
    %v641 = vsel %vm640, %v633, %v637
    %v642 = vand.u32 2147483647, %v617
    %vm643 = vcmp.eq.f32.partialorder %v642, 8.507059e+37
    %v644 = vand.u32 %v617, 2147483648
    %v645 = vor.u32 1.1754944e-38, %v644
    %v646 = vsel %vm643, %v645, %v641
    %v647 = vmul.f32 1.0, %v646
    %v650 = vrot.slane %v647, 7
    %vm651 = vcmask 1040384
    %v652 = vsel %vm651, %v632, %v650
    %v654 = vlaneseq
    %vm655 = vcmp.ge.s32.totalorder %v654, 0
    %vm656 = vcmp.lt.s32.totalorder %v654, 256
    %vm657 = vmand %vm655, %vm656
    %658 = vst.msk [vmem:[#allocation3] sm:$0x3] %vm657, %v652
    // Predicated region
    $region38: #{tpu_custom_call.1} parent=1 // pred_check
      _
    $region39: #{tpu_custom_call.1} parent=1 // pred_check_branch
      %660 = sbr.rel (0) target = $region41
    $region40: #{tpu_custom_call.1} parent=1 // pred_region
      %662 = vsyncadd [#allocation4], 0
      %s664 = sshll.u32 [#allocation3], 4
      %s665 = int_to_ptr.vmem [resolvable:$true] %s664
      %s666 = sshll.u32 %s9, 4
      %s667 = int_to_ptr.hbm [resolvable:$true] %s666
      %669 = dma.vmem_to_hbm [thread:$0]  %s665, 32, %s667, [#allocation4]
    $region41: #{tpu_custom_call.1} parent=1 // pred_fallthru
      _
    // Predicated region
    $region42: #{tpu_custom_call.1} parent=1 // pred_check
      _
    $region43: #{tpu_custom_call.1} parent=1 // pred_check_branch
      %671 = sbr.rel (0) target = $region45
    $region44: #{tpu_custom_call.1} parent=1 // pred_region
      %673 = dma.done [#allocation4], 32
    $region45: #{tpu_custom_call.1} parent=1 // pred_fallthru
      _
    %674 = vsyncpa [#allocation4], 1

</llo_original>
